<compile_context>
chip_gen: v6e
topology: v6e:2x2x1
jax: 0.10.0
libtpu: 0.0.40
codegen_flags: <defaults>
</compile_context>

<pallas_src>
import functools

import jax
import jax.numpy as jnp
from jax import lax
from jax.experimental import pallas as pl
from jax.experimental.pallas import tpu as pltpu

EPS = 1e-5  # torch.nn.LayerNorm default

_MIB = 1024 * 1024
VMEM_FRACTION = 0.80          # fraction of physical per-core VMEM we let Mosaic use
WEIGHT_VMEM_FRACTION = 0.40   # fraction of the limit reserved for the W^T block
FIXED_MARGIN_BYTES = 2 * _MIB
MIN_ROW_TILES = 4             # keep both v7x TensorCores fed (and amortize ramp-up)


def _round_up(x, m):
    return ((x + m - 1) // m) * m


def _cdiv(a, b):
    return -(-a // b)


@functools.lru_cache(maxsize=None)
def _vmem_capacity_bytes():
    try:
        return int(pltpu.get_tpu_info().vmem_capacity_bytes)
    except Exception:
        return 64 * _MIB  # conservative (v7x per-core) fallback


def _pick_col_tile(d_pad, mm_bytes, weight_budget_bytes):
    """Largest multiple-of-128 divisor of d_pad whose weight block fits the budget."""
    if d_pad * d_pad * mm_bytes <= weight_budget_bytes:
        return d_pad  # full W^T resident, single-buffered
    tn = 128
    cand = d_pad - 128
    while cand >= 128:
        if d_pad % cand == 0 and 2 * d_pad * cand * mm_bytes <= weight_budget_bytes:
            tn = cand
            break
        cand -= 128
    return tn


def _pick_tile_rows(rows, d_pad, tn, x_bytes, out_bytes, mm_bytes,
                    max_tile_rows, row_budget_bytes):
    """Row tile: VMEM-bounded, >= MIN_ROW_TILES grid steps when possible, minimal pad."""
    rows8 = _round_up(max(rows, 1), 8)
    # Per-row VMEM: 2x pipelined x tile + y scratch + ~3 live f32 intermediates
    # along D, plus 2x pipelined out tile + f32 accumulator along tn.
    per_row = d_pad * (2 * x_bytes + mm_bytes + 3 * 4) + tn * (2 * out_bytes + 4)
    cap = max(8, (row_budget_bytes // per_row) // 8 * 8)
    cap = min(cap, max_tile_rows, rows8)

    min_tiles = max(1, min(MIN_ROW_TILES, rows8 // 8))
    n_tiles = max(min_tiles, _cdiv(rows8, cap))
    tile = _round_up(_cdiv(rows8, n_tiles), 8)

    # MXU-friendly M alignment (v6e/v7x: 256, v5e: 128) only if the extra pad
    # stays under one alignment unit (avoids a full dead tile of work).
    for align in (256, 128):
        t = _round_up(tile, align)
        if t <= cap and n_tiles * t - rows <= align:
            tile = t
            break
    return max(8, min(tile, cap))


def prenorm_linear_kernel(x_ref, gamma_ref, beta_ref, w_ref, bias_ref, o_ref,
                          y_scratch, *, d_valid, d_pad):
    # Grid = (row tiles i, output-column tiles j), j innermost.  LayerNorm is
    # computed once per row tile (j == 0) into a VMEM scratch in the matmul
    # dtype; every j step then runs one (tile_rows x D) @ (D x tn) MXU matmul.
    @pl.when(pl.program_id(1) == 0)
    def _():
        x = x_ref[...].astype(jnp.float32)
        inv_d = 1.0 / d_valid
        mean = jnp.sum(x, axis=-1, keepdims=True) * inv_d
        centered = x - mean
        if d_valid != d_pad:  # mask zero-padded feature lanes out of the stats
            col = lax.broadcasted_iota(jnp.int32, (1, d_pad), 1)
            centered = jnp.where(col < d_valid, centered, 0.0)
        var = jnp.sum(centered * centered, axis=-1, keepdims=True) * inv_d
        rstd = lax.rsqrt(var + EPS)
        # Fused affine: no separate x_hat materialization.
        y = centered * (rstd * gamma_ref[...].astype(jnp.float32)) \
            + beta_ref[...].astype(jnp.float32)
        y_scratch[...] = y.astype(y_scratch.dtype)

    out = jnp.dot(y_scratch[...], w_ref[...], preferred_element_type=jnp.float32)
    o_ref[...] = (out + bias_ref[...].astype(jnp.float32)).astype(o_ref.dtype)


@functools.partial(jax.jit, static_argnames=("max_tile_rows", "matmul_dtype"))
def prenorm_forward(x, gamma, beta, w_t, b, *, max_tile_rows=512,
                    matmul_dtype=jnp.bfloat16):
    """x: (B, S, D). gamma/beta: (D,). w_t: (D, D) (Linear weight, pre-transposed). b: (D,)."""
    B, S, D = x.shape
    rows = B * S

    x_bytes = jnp.dtype(x.dtype).itemsize
    out_bytes = x_bytes
    mm_bytes = jnp.dtype(matmul_dtype).itemsize

    # Generation-aware VMEM budget (v7x: ~51 MiB, v5e/v6e: ~102 MiB).
    vmem_limit = max(40 * _MIB, int(_vmem_capacity_bytes() * VMEM_FRACTION))

    # Feature dim padded to a lane-dense multiple of 128 (no-op for 768/1024).
    D_pad = _round_up(D, 128)

    # Output-column tile: full W^T when it fits, otherwise (D, tn) blocks.
    tn = _pick_col_tile(D_pad, mm_bytes, int(vmem_limit * WEIGHT_VMEM_FRACTION))
    n_col_tiles = D_pad // tn
    weight_block_bytes = (1 if n_col_tiles == 1 else 2) * D_pad * tn * mm_bytes
    params_bytes = 6 * D_pad * 4  # gamma/beta/bias blocks (generous)

    row_budget = vmem_limit - weight_block_bytes - params_bytes - FIXED_MARGIN_BYTES
    tile_rows = _pick_tile_rows(rows, D_pad, tn, x_bytes, out_bytes, mm_bytes,
                                max_tile_rows, row_budget)

    padded_rows = _round_up(rows, tile_rows)
    n_row_tiles = padded_rows // tile_rows

    # Wrapper-side padding (rows to a tile multiple, features to 128 lanes);
    # the in-kernel fast path stays unmasked except for the LN statistics.
    x2 = x.reshape(rows, D)
    if D_pad != D:
        dpad = D_pad - D
        x2 = jnp.pad(x2, ((0, 0), (0, dpad)))
        gamma = jnp.pad(gamma, (0, dpad))
        beta = jnp.pad(beta, (0, dpad))
        b = jnp.pad(b, (0, dpad))
        w_t = jnp.pad(w_t, ((0, dpad), (0, dpad)))
    if padded_rows != rows:
        x2 = jnp.pad(x2, ((0, padded_rows - rows), (0, 0)))

    w_mm = w_t.astype(matmul_dtype)  # cast once, outside the grid (bf16 MXU path)
    gamma2 = gamma.reshape(1, D_pad)
    beta2 = beta.reshape(1, D_pad)
    b2 = b.reshape(1, D_pad)

    # Constant-index operands are single-buffered (never re-DMA'd).
    resident = dict(pipeline_mode=pl.Buffered(1))
    w_mode = resident if n_col_tiles == 1 else {}

    kernel = functools.partial(prenorm_linear_kernel, d_valid=D, d_pad=D_pad)

    out = pl.pallas_call(
        kernel,
        out_shape=jax.ShapeDtypeStruct((padded_rows, D_pad), x.dtype),
        grid_spec=pltpu.PrefetchScalarGridSpec(
            num_scalar_prefetch=0,
            grid=(n_row_tiles, n_col_tiles),
            in_specs=[
                pl.BlockSpec((tile_rows, D_pad), lambda i, j: (i, 0)),        # x tile (resident over j)
                pl.BlockSpec((1, D_pad), lambda i, j: (0, 0), **resident),    # gamma
                pl.BlockSpec((1, D_pad), lambda i, j: (0, 0), **resident),    # beta
                pl.BlockSpec((D_pad, tn), lambda i, j: (0, j), **w_mode),     # W^T column block
                pl.BlockSpec((1, tn), lambda i, j: (0, j), **w_mode),         # bias column block
            ],
            out_specs=pl.BlockSpec((tile_rows, tn), lambda i, j: (i, j)),
            scratch_shapes=[pltpu.VMEM((tile_rows, D_pad), matmul_dtype)],    # LN(y) cache
        ),
        compiler_params=pltpu.CompilerParams(
            dimension_semantics=("parallel", "arbitrary"),  # row tiles shard across v7x TCs
            vmem_limit_bytes=int(vmem_limit),
        ),
    )(x2, gamma2, beta2, w_mm, b2)

    if padded_rows != rows or D_pad != D:
        out = out[:rows, :D]
    return out.reshape(B, S, D)


def reference_forward(x, gamma, beta, w_t, b):
    xf = x.astype(jnp.float32)
    mean = jnp.mean(xf, axis=-1, keepdims=True)
    var = jnp.mean((xf - mean) ** 2, axis=-1, keepdims=True)
    y = (xf - mean) / jnp.sqrt(var + EPS) * gamma + beta
    return (y @ w_t.astype(jnp.float32) + b).astype(x.dtype)


if __name__ == "__main__":
    key = jax.random.PRNGKey(0)
    k_x, k_g, k_b, k_w, k_bias, k_x2 = jax.random.split(key, 6)

    B, S, D = 2, 8, 32  # batch, seq, dim

    x = jax.random.normal(k_x, (B, S, D), dtype=jnp.float32)

    # LayerNorm params (torch default is ones/zeros; perturb so the affine
    # part is actually exercised).
    gamma = 1.0 + 0.1 * jax.random.normal(k_g, (D,), dtype=jnp.float32)
    beta = 0.1 * jax.random.normal(k_b, (D,), dtype=jnp.float32)

    # fn = Linear(D, D) weights.
    w = jax.random.normal(k_w, (D, D), dtype=jnp.float32) * (1.0 / jnp.sqrt(D))
    bias = 0.01 * jax.random.normal(k_bias, (D,), dtype=jnp.float32)
    w_t = w.T  # pre-transposed so the kernel does y @ W^T

    ref = reference_forward(x, gamma, beta, w_t, bias)

    # Default (perf) path: bf16 MXU matmul with f32 accumulation.
    out_bf16 = jax.block_until_ready(prenorm_forward(x, gamma, beta, w_t, bias))
    assert out_bf16.shape == (B, S, D)
    assert jnp.allclose(out_bf16, ref, atol=3e-2, rtol=3e-2), "mismatch (bf16 MXU) vs reference"

    # Full-precision path: tight check of LN + matmul semantics.
    out_f32 = jax.block_until_ready(
        prenorm_forward(x, gamma, beta, w_t, bias, matmul_dtype=jnp.float32))
    assert jnp.allclose(out_f32, ref, atol=1e-4, rtol=1e-4), "mismatch (f32) vs reference"

    # Ragged-row path: B*S not a multiple of the row tile (padding sliced off).
    x_ragged = jax.random.normal(k_x2, (3, 5, D), dtype=jnp.float32)
    out_r = jax.block_until_ready(
        prenorm_forward(x_ragged, gamma, beta, w_t, bias, matmul_dtype=jnp.float32))
    ref_r = reference_forward(x_ragged, gamma, beta, w_t, bias)
    assert out_r.shape == (3, 5, D)
    assert jnp.allclose(out_r, ref_r, atol=1e-4, rtol=1e-4), "mismatch (ragged) vs reference"

    print("KERNEL_OK")
</pallas_src>

<mosaic_0001>
module attributes {stable_mosaic.version = 11 : i64} {
  func.func @prenorm_linear_kernel(%arg0: i32, %arg1: i32, %arg2: memref<8x128xf32, #tpu.memory_space<vmem>>, %arg3: memref<1x128xf32, #tpu.memory_space<vmem>>, %arg4: memref<1x128xf32, #tpu.memory_space<vmem>>, %arg5: memref<128x128xbf16, #tpu.memory_space<vmem>>, %arg6: memref<1x128xf32, #tpu.memory_space<vmem>>, %arg7: memref<8x128xf32, #tpu.memory_space<vmem>>, %arg8: memref<8x128xbf16, #tpu.memory_space<vmem>>) attributes {dimension_semantics = [#tpu.dimension_semantics<parallel>, #tpu.dimension_semantics<arbitrary>], iteration_bounds = array<i64: 2, 1>, scalar_prefetch = 0 : i64, scratch_operands = 1 : i64, tpu.core_type = #tpu.core_type<tc>, window_params = [{transform_indices = @transform_0, window_bounds = array<i64: 8, 128>}, {pipeline_mode = #tpu.pipeline_mode<synchronous>, transform_indices = @transform_1, window_bounds = array<i64: 1, 128>}, {pipeline_mode = #tpu.pipeline_mode<synchronous>, transform_indices = @transform_2, window_bounds = array<i64: 1, 128>}, {pipeline_mode = #tpu.pipeline_mode<synchronous>, transform_indices = @transform_3, window_bounds = array<i64: 128, 128>}, {pipeline_mode = #tpu.pipeline_mode<synchronous>, transform_indices = @transform_4, window_bounds = array<i64: 1, 128>}, {transform_indices = @transform_5, window_bounds = array<i64: 8, 128>}]} {
    %c0_i32 = arith.constant 0 : i32
    %0 = arith.cmpi eq, %arg1, %c0_i32 : i32
    %1 = arith.extui %0 : i1 to i32
    %c0_i32_0 = arith.constant 0 : i32
    %2 = arith.cmpi ne, %1, %c0_i32_0 : i32
    scf.if %2 {
      %c0_8 = arith.constant 0 : index
      %c0_9 = arith.constant 0 : index
      %10 = vector.load %arg2[%c0_8, %c0_9] : memref<8x128xf32, #tpu.memory_space<vmem>>, vector<8x128xf32>
      %cst_10 = arith.constant dense<0.000000e+00> : vector<8xf32>
      %11 = vector.multi_reduction <add>, %10, %cst_10 [1] : vector<8x128xf32> to vector<8xf32>
      %12 = vector.shape_cast %11 : vector<8xf32> to vector<8x1xf32>
      %cst_11 = arith.constant 3.125000e-02 : f32
      %13 = vector.broadcast %cst_11 : f32 to vector<8x1xf32>
      %14 = arith.mulf %12, %13 : vector<8x1xf32>
      %15 = vector.broadcast %14 : vector<8x1xf32> to vector<8x128xf32>
      %16 = arith.subf %10, %15 : vector<8x128xf32>
      %17 = tpu.iota {dimensions = array<i32: 1>} : vector<1x128xi32>
      %c32_i32 = arith.constant 32 : i32
      %18 = vector.broadcast %c32_i32 : i32 to vector<1x128xi32>
      %19 = arith.cmpi slt, %17, %18 : vector<1x128xi32>
      %cst_12 = arith.constant 0.000000e+00 : f32
      %20 = vector.shape_cast %19 : vector<1x128xi1> to vector<1x128xi1>
      %21 = vector.broadcast %20 : vector<1x128xi1> to vector<8x128xi1>
      %22 = vector.broadcast %cst_12 : f32 to vector<8x128xf32>
      %23 = arith.select %21, %16, %22 : vector<8x128xi1>, vector<8x128xf32>
      %24 = arith.mulf %23, %23 : vector<8x128xf32>
      %cst_13 = arith.constant dense<0.000000e+00> : vector<8xf32>
      %25 = vector.multi_reduction <add>, %24, %cst_13 [1] : vector<8x128xf32> to vector<8xf32>
      %26 = vector.shape_cast %25 : vector<8xf32> to vector<8x1xf32>
      %cst_14 = arith.constant 3.125000e-02 : f32
      %27 = vector.broadcast %cst_14 : f32 to vector<8x1xf32>
      %28 = arith.mulf %26, %27 : vector<8x1xf32>
      %cst_15 = arith.constant 9.99999974E-6 : f32
      %29 = vector.broadcast %cst_15 : f32 to vector<8x1xf32>
      %30 = arith.addf %28, %29 : vector<8x1xf32>
      %31 = math.rsqrt %30 : vector<8x1xf32>
      %c0_16 = arith.constant 0 : index
      %c0_17 = arith.constant 0 : index
      %32 = vector.load %arg3[%c0_16, %c0_17] : memref<1x128xf32, #tpu.memory_space<vmem>>, vector<1x128xf32>
      %33 = vector.broadcast %31 : vector<8x1xf32> to vector<8x128xf32>
      %34 = vector.broadcast %32 : vector<1x128xf32> to vector<8x128xf32>
      %35 = arith.mulf %33, %34 : vector<8x128xf32>
      %36 = arith.mulf %23, %35 : vector<8x128xf32>
      %c0_18 = arith.constant 0 : index
      %c0_19 = arith.constant 0 : index
      %37 = vector.load %arg4[%c0_18, %c0_19] : memref<1x128xf32, #tpu.memory_space<vmem>>, vector<1x128xf32>
      %38 = vector.broadcast %37 : vector<1x128xf32> to vector<8x128xf32>
      %39 = arith.addf %36, %38 : vector<8x128xf32>
      %40 = arith.truncf %39 : vector<8x128xf32> to vector<8x128xbf16>
      %c0_20 = arith.constant 0 : index
      %c0_21 = arith.constant 0 : index
      %41 = vector.load %arg8[%c0_20, %c0_21] : memref<8x128xbf16, #tpu.memory_space<vmem>>, vector<8x128xbf16>
      tpu.vector_store %arg8[%c0_20, %c0_21], %40 {strides = array<i32>} : memref<8x128xbf16, #tpu.memory_space<vmem>>, vector<8x128xbf16>,
    } else {
    }
    %c0 = arith.constant 0 : index
    %c0_1 = arith.constant 0 : index
    %3 = vector.load %arg8[%c0, %c0_1] : memref<8x128xbf16, #tpu.memory_space<vmem>>, vector<8x128xbf16>
    %c0_2 = arith.constant 0 : index
    %c0_3 = arith.constant 0 : index
    %4 = vector.load %arg5[%c0_2, %c0_3] : memref<128x128xbf16, #tpu.memory_space<vmem>>, vector<128x128xbf16>
    %cst = arith.constant dense<0.000000e+00> : vector<8x128xf32>
    %5 = tpu.matmul %3, %4, %cst {dimension_numbers = #tpu.dot_dimension_numbers<[1], [0], [0], [1], [0, 0, 1, 1], [], []>} : vector<8x128xbf16>, vector<128x128xbf16>, vector<8x128xf32> -> vector<8x128xf32>
    %c0_4 = arith.constant 0 : index
    %c0_5 = arith.constant 0 : index
    %6 = vector.load %arg6[%c0_4, %c0_5] : memref<1x128xf32, #tpu.memory_space<vmem>>, vector<1x128xf32>
    %7 = vector.broadcast %6 : vector<1x128xf32> to vector<8x128xf32>
    %8 = arith.addf %5, %7 : vector<8x128xf32>
    %c0_6 = arith.constant 0 : index
    %c0_7 = arith.constant 0 : index
    %9 = vector.load %arg7[%c0_6, %c0_7] : memref<8x128xf32, #tpu.memory_space<vmem>>, vector<8x128xf32>
    tpu.vector_store %arg7[%c0_6, %c0_7], %8 {strides = array<i32>} : memref<8x128xf32, #tpu.memory_space<vmem>>, vector<8x128xf32>,
    return
  }
  func.func @transform_0(%arg0: i32, %arg1: i32) -> (i32, i32) {
    %c0_i32 = arith.constant 0 : i32
    %c0_i32_0 = arith.constant 0 : i32
    return %arg0, %c0_i32 : i32, i32
  }
  func.func @transform_1(%arg0: i32, %arg1: i32) -> (i32, i32) {
    %c0_i32 = arith.constant 0 : i32
    %c0_i32_0 = arith.constant 0 : i32
    %c0_i32_1 = arith.constant 0 : i32
    return %c0_i32, %c0_i32_0 : i32, i32
  }
  func.func @transform_2(%arg0: i32, %arg1: i32) -> (i32, i32) {
    %c0_i32 = arith.constant 0 : i32
    %c0_i32_0 = arith.constant 0 : i32
    %c0_i32_1 = arith.constant 0 : i32
    return %c0_i32, %c0_i32_0 : i32, i32
  }
  func.func @transform_3(%arg0: i32, %arg1: i32) -> (i32, i32) {
    %c0_i32 = arith.constant 0 : i32
    %c0_i32_0 = arith.constant 0 : i32
    return %c0_i32, %arg1 : i32, i32
  }
  func.func @transform_4(%arg0: i32, %arg1: i32) -> (i32, i32) {
    %c0_i32 = arith.constant 0 : i32
    %c0_i32_0 = arith.constant 0 : i32
    return %c0_i32, %arg1 : i32, i32
  }
  func.func @transform_5(%arg0: i32, %arg1: i32) -> (i32, i32) {
    %c0_i32 = arith.constant 0 : i32
    return %arg0, %arg1 : i32, i32
  }
}

</mosaic_0001>

<llo_original>
// kernel: prenorm_forward.1
$region0: #{prenorm_forward.1}
  #allocation0 [shape = 'u32[]', space=smem, size = 0x4, offset = 0x4, fixed_abs, tag = 'smem constant byte address 0x4 - core index']
  #allocation1 [shape = 'u32[144,128]{1,0:T(1,128)}', space=vmem, size = 0x12000, scoped, tag = 'internal scratch']
  #allocation2 [shape = 'bf16[8,128]{1,0:T(8,128)(2,1)}', space=vmem, size = 0x800, scoped, tag = 'scratch operand']
  %s0 = inlined_call_operand.vmem [shape: f32[16,128], index: 0, kind: input, shape index: {}]
  %s1 = inlined_call_operand.vmem [shape: f32[1,128], index: 1, kind: input, shape index: {}]
  %s2 = inlined_call_operand.vmem [shape: f32[1,128], index: 2, kind: input, shape index: {}]
  %s3 = inlined_call_operand.vmem [shape: bf16[128,128], index: 3, kind: input, shape index: {}]
  %s4 = inlined_call_operand.vmem [shape: f32[1,128], index: 4, kind: input, shape index: {}]
  %s5 = inlined_call_operand.vmem [shape: f32[16,128], index: 5, kind: output, shape index: {}]
  %s6 = sld [smem:[#allocation0]]
  $region57: #{prenorm_forward.1} parent=0
    _
  %s8 = ssub.s32 1, %s6
  %s9 = scalar_select 0, %s8, %s6
  loop: start=0, step=1, limit=4
  $region2: #{prenorm_forward.1} parent=0 // loop_pre_header
    _
  $region3: #{prenorm_forward.1} parent=0 // loop_header
    %s11 = sphi 0, %s15
    %p12 = scmp.ge.s32.totalorder %s11, 4
    %s18 = sphi 0, %s30
    %s19 = sphi 0, %s26
    %s20 = sphi 0, %s18
    %s21 = sphi 0, %s19
    %s22 = sphi 0, %s20
    %s23 = sphi 0, %s21
    %s33 = sphi 0, %s35
    %s36 = sphi 0, %s33
    %s37 = sphi 0, %s36
    %s53 = sphi 0, %s37
    %s57 = sphi 0, %s57
    %s59 = sphi 0, %s57
    %s60 = sphi 0, %s59
    %s74 = sphi 0, %s60
    %s78 = sphi 0, %s78
    %s80 = sphi 0, %s78
    %s81 = sphi 0, %s80
    %s95 = sphi 0, %s81
    %s101 = sphi 0, %s103
    %s104 = sphi 0, %s101
    %s105 = sphi 0, %s104
    %s121 = sphi 0, %s105
    %s127 = sphi 0, %s129
    %s130 = sphi 0, %s127
    %s131 = sphi 0, %s130
    %s147 = sphi 0, %s131
    %s155 = sphi 0, %s157
    %s158 = sphi 0, %s155
    %s159 = sphi 0, %s158
    %s175 = sphi 0, %s159
  $region4: #{prenorm_forward.1} parent=0 // loop_header_branch
    %14 = sbr.rel (%p12) target = $region8
  $region5: #{prenorm_forward.1} parent=0 // loop_body
    %s16 = ssub.s32 %s11, 1
    %s17 = ssub.s32 %s11, 2
    %s24 = sadd.s32 1, %s19
    %p25 = scmp.ge.s32.totalorder %s24, 1
    %s26 = scalar_select %p25, 0, %s24
    %s27 = sadd.s32 1, %s18
    %s28 = scalar_select %p25, %s27, %s18
    %p29 = scmp.ge.s32.totalorder %s28, 2
    %s30 = scalar_select %p29, 0, %s28
    %s31 = ssub.s32 %s18, %s30
    %p32 = scmp.eq.s32.totalorder %s31, 0
    %s34 = sadd.s32 %s33, 1
    %s35 = scalar_select %p32, %s33, %s34
    %p38 = pneg %p32
    %p39 = scmp.eq.s32.totalorder %s11, 1
    %p40 = por %p38, %p39
    %p41 = scmp.ne.s32.totalorder %s33, %s36
    %p42 = scmp.eq.s32.totalorder %s11, 0
    %p43 = por %p41, %p42
    %p44 = scmp.ne.s32.totalorder %s33, %s36
    %p45 = scmp.eq.s32.totalorder %s16, 1
    %p46 = por %p44, %p45
    %p47 = scmp.ne.s32.totalorder %s36, %s37
    %p48 = scmp.eq.s32.totalorder %s16, 0
    %p49 = por %p47, %p48
    %p50 = scmp.ne.s32.totalorder %s36, %s37
    %p51 = scmp.eq.s32.totalorder %s17, 1
    %p52 = por %p50, %p51
    %p54 = scmp.ne.s32.totalorder %s37, %s53
    %p55 = scmp.eq.s32.totalorder %s17, 0
    %p56 = por %p54, %p55
    %s58 = sadd.s32 %s57, 1
    %p61 = scmp.eq.s32.totalorder %s11, 1
    %p62 = scmp.ne.s32.totalorder %s57, %s59
    %p63 = scmp.eq.s32.totalorder %s11, 0
    %p64 = por %p62, %p63
    %p65 = scmp.ne.s32.totalorder %s57, %s59
    %p66 = scmp.eq.s32.totalorder %s16, 1
    %p67 = por %p65, %p66
    %p68 = scmp.ne.s32.totalorder %s59, %s60
    %p69 = scmp.eq.s32.totalorder %s16, 0
    %p70 = por %p68, %p69
    %p71 = scmp.ne.s32.totalorder %s59, %s60
    %p72 = scmp.eq.s32.totalorder %s17, 1
    %p73 = por %p71, %p72
    %p75 = scmp.ne.s32.totalorder %s60, %s74
    %p76 = scmp.eq.s32.totalorder %s17, 0
    %p77 = por %p75, %p76
    %s79 = sadd.s32 %s78, 1
    %p82 = scmp.eq.s32.totalorder %s11, 1
    %p83 = scmp.ne.s32.totalorder %s78, %s80
    %p84 = scmp.eq.s32.totalorder %s11, 0
    %p85 = por %p83, %p84
    %p86 = scmp.ne.s32.totalorder %s78, %s80
    %p87 = scmp.eq.s32.totalorder %s16, 1
    %p88 = por %p86, %p87
    %p89 = scmp.ne.s32.totalorder %s80, %s81
    %p90 = scmp.eq.s32.totalorder %s16, 0
    %p91 = por %p89, %p90
    %p92 = scmp.ne.s32.totalorder %s80, %s81
    %p93 = scmp.eq.s32.totalorder %s17, 1
    %p94 = por %p92, %p93
    %p96 = scmp.ne.s32.totalorder %s81, %s95
    %p97 = scmp.eq.s32.totalorder %s17, 0
    %p98 = por %p96, %p97
    %s99 = ssub.s32 %s19, %s26
    %p100 = scmp.eq.s32.totalorder %s99, 0
    %s102 = sadd.s32 %s101, 1
    %s103 = scalar_select %p100, %s101, %s102
    %p106 = pneg %p100
    %p107 = scmp.eq.s32.totalorder %s11, 1
    %p108 = por %p106, %p107
    %p109 = scmp.ne.s32.totalorder %s101, %s104
    %p110 = scmp.eq.s32.totalorder %s11, 0
    %p111 = por %p109, %p110
    %p112 = scmp.ne.s32.totalorder %s101, %s104
    %p113 = scmp.eq.s32.totalorder %s16, 1
    %p114 = por %p112, %p113
    %p115 = scmp.ne.s32.totalorder %s104, %s105
    %p116 = scmp.eq.s32.totalorder %s16, 0
    %p117 = por %p115, %p116
    %p118 = scmp.ne.s32.totalorder %s104, %s105
    %p119 = scmp.eq.s32.totalorder %s17, 1
    %p120 = por %p118, %p119
    %p122 = scmp.ne.s32.totalorder %s105, %s121
    %p123 = scmp.eq.s32.totalorder %s17, 0
    %p124 = por %p122, %p123
    %s125 = ssub.s32 %s19, %s26
    %p126 = scmp.eq.s32.totalorder %s125, 0
    %s128 = sadd.s32 %s127, 1
    %s129 = scalar_select %p126, %s127, %s128
    %p132 = pneg %p126
    %p133 = scmp.eq.s32.totalorder %s11, 1
    %p134 = por %p132, %p133
    %p135 = scmp.ne.s32.totalorder %s127, %s130
    %p136 = scmp.eq.s32.totalorder %s11, 0
    %p137 = por %p135, %p136
    %p138 = scmp.ne.s32.totalorder %s127, %s130
    %p139 = scmp.eq.s32.totalorder %s16, 1
    %p140 = por %p138, %p139
    %p141 = scmp.ne.s32.totalorder %s130, %s131
    %p142 = scmp.eq.s32.totalorder %s16, 0
    %p143 = por %p141, %p142
    %p144 = scmp.ne.s32.totalorder %s130, %s131
    %p145 = scmp.eq.s32.totalorder %s17, 1
    %p146 = por %p144, %p145
    %p148 = scmp.ne.s32.totalorder %s131, %s147
    %p149 = scmp.eq.s32.totalorder %s17, 0
    %p150 = por %p148, %p149
    %s151 = ssub.s32 %s18, %s30
    %s152 = ssub.s32 %s19, %s26
    %s153 = sor.u32 %s151, %s152
    %p154 = scmp.eq.s32.totalorder %s153, 0
    %s156 = sadd.s32 %s155, 1
    %s157 = scalar_select %p154, %s155, %s156
    %p160 = pneg %p154
    %p161 = scmp.eq.s32.totalorder %s11, 1
    %p162 = por %p160, %p161
    %p163 = scmp.ne.s32.totalorder %s155, %s158
    %p164 = scmp.eq.s32.totalorder %s11, 0
    %p165 = por %p163, %p164
    %p166 = scmp.ne.s32.totalorder %s155, %s158
    %p167 = scmp.eq.s32.totalorder %s16, 1
    %p168 = por %p166, %p167
    %p169 = scmp.ne.s32.totalorder %s158, %s159
    %p170 = scmp.eq.s32.totalorder %s16, 0
    %p171 = por %p169, %p170
    %p172 = scmp.ne.s32.totalorder %s158, %s159
    %p173 = scmp.eq.s32.totalorder %s17, 1
    %p174 = por %p172, %p173
    %p176 = scmp.ne.s32.totalorder %s159, %s175
    %p177 = scmp.eq.s32.totalorder %s17, 0
    %p178 = por %p176, %p177
    %p179 = scmp.le.s32.totalorder 1, %s11
    %p180 = scmp.lt.s32.totalorder %s11, 3
    %p181 = pnand %p179, %p180
    %p182 = pneg %p181
    // Predicated region
    $region9: #{prenorm_forward.1} parent=5 // pred_check
      _
    $region10: #{prenorm_forward.1} parent=5 // pred_check_branch
      %184 = sbr.rel (%p181) target = $region12
    $region11: #{prenorm_forward.1} parent=5 // pred_region
      %s185 = ssub.s32 %s11, 1
      // Predicated region
      $region13: #{prenorm_forward.1} parent=11 // pred_check
        %p186 = pneg %p70
      $region14: #{prenorm_forward.1} parent=11 // pred_check_branch
        %188 = sbr.rel (%p186) target = $region16
      $region15: #{prenorm_forward.1} parent=11 // pred_region
        _
      $region16: #{prenorm_forward.1} parent=11 // pred_fallthru
        _
      // Predicated region
      $region17: #{prenorm_forward.1} parent=11 // pred_check
        %p189 = pneg %p91
      $region18: #{prenorm_forward.1} parent=11 // pred_check_branch
        %191 = sbr.rel (%p189) target = $region20
      $region19: #{prenorm_forward.1} parent=11 // pred_region
        _
      $region20: #{prenorm_forward.1} parent=11 // pred_fallthru
        _
      // Predicated region
      $region21: #{prenorm_forward.1} parent=11 // pred_check
        %p192 = pneg %p117
      $region22: #{prenorm_forward.1} parent=11 // pred_check_branch
        %194 = sbr.rel (%p192) target = $region24
      $region23: #{prenorm_forward.1} parent=11 // pred_region
        %p195 = scmp.lt.s32.totalorder %s21, 0
        %s196 = scalar_select %p195, %s21, 0
        %s197 = smul.addr %s196, 4
        %s198 = scalar_lea.vmem %s3, %s197
      $region24: #{prenorm_forward.1} parent=11 // pred_fallthru
        _
      // Predicated region
      $region25: #{prenorm_forward.1} parent=11 // pred_check
        %p199 = pneg %p143
      $region26: #{prenorm_forward.1} parent=11 // pred_check_branch
        %201 = sbr.rel (%p199) target = $region28
      $region27: #{prenorm_forward.1} parent=11 // pred_region
        %p202 = scmp.lt.s32.totalorder %s21, 0
        %s203 = scalar_select %p202, %s21, 0
        %s204 = scalar_lea.vmem %s4, %s203
      $region28: #{prenorm_forward.1} parent=11 // pred_fallthru
        _
    $region12: #{prenorm_forward.1} parent=5 // pred_fallthru
      _
    %p205 = scmp.lt.s32.totalorder %s11, 2
    // Predicated region
    $region29: #{prenorm_forward.1} parent=5 // pred_check
      %p206 = pneg %p205
    $region30: #{prenorm_forward.1} parent=5 // pred_check_branch
      %208 = sbr.rel (%p206) target = $region32
    $region31: #{prenorm_forward.1} parent=5 // pred_region
      // Predicated region
      $region33: #{prenorm_forward.1} parent=31 // pred_check
        %p209 = pneg %p43
      $region34: #{prenorm_forward.1} parent=31 // pred_check_branch
        %211 = sbr.rel (%p209) target = $region36
      $region35: #{prenorm_forward.1} parent=31 // pred_region
        %p212 = scmp.lt.s32.totalorder %s18, 1
        %s213 = scalar_select %p212, %s18, 1
        %s214 = smul.addr %s213, 8
        %s215 = scalar_lea.vmem %s0, %s214
      $region36: #{prenorm_forward.1} parent=31 // pred_fallthru
        _
    $region32: #{prenorm_forward.1} parent=5 // pred_fallthru
      _
    %p216 = scmp.le.s32.totalorder 1, %s11
    %p217 = scmp.lt.s32.totalorder %s11, 3
    %p218 = pnand %p216, %p217
    %p219 = pneg %p218
    // Predicated region
    $region37: #{prenorm_forward.1} parent=5 // pred_check
      _
    $region38: #{prenorm_forward.1} parent=5 // pred_check_branch
      %221 = sbr.rel (%p218) target = $region40
    $region39: #{prenorm_forward.1} parent=5 // pred_region
      %s222 = ssub.s32 %s11, 1
      %p223 = scmp.lt.s32.totalorder %s20, 1
      %s224 = scalar_select %p223, %s20, 1
      %s225 = smul.addr %s224, 8
      %s226 = scalar_lea.vmem %s0, %s225
      %p227 = pneg %p49
      %p228 = pneg %p46
      %p229 = pneg %p70
      %p230 = pneg %p67
      %p231 = pneg %p91
      %p232 = pneg %p88
      %p233 = scmp.lt.s32.totalorder %s21, 0
      %s234 = scalar_select %p233, %s21, 0
      %s235 = smul.addr %s234, 4
      %s236 = scalar_lea.vmem %s3, %s235
      %p237 = pneg %p117
      %p238 = pneg %p114
      %p239 = scmp.lt.s32.totalorder %s21, 0
      %s240 = scalar_select %p239, %s21, 0
      %s241 = scalar_lea.vmem %s4, %s240
      %p242 = pneg %p143
      %p243 = pneg %p140
      %p244 = pneg %p171
      %p245 = pneg %p168
      %p246 = scmp.lt.s32.totalorder %s20, 1
      %s247 = scalar_select %p246, %s20, 1
      %p248 = scmp.lt.s32.totalorder %s21, 0
      %s249 = scalar_select %p248, %s21, 0
      %s250 = sadd.s32 %s249, %s247
      %s251 = smul.addr %s250, 8
      %s252 = scalar_lea.vmem %s5, %s251
      %p253 = scmp.lt.s32.totalorder %s20, 1
      %s254 = scalar_select %p253, %s20, 1
      %s255 = smul.addr %s254, 8
      %s256 = scalar_lea.vmem %s0, %s255
      %p257 = scmp.lt.s32.totalorder %s21, 0
      %s258 = scalar_select %p257, %s21, 0
      %s259 = smul.addr %s258, 4
      %s260 = scalar_lea.vmem %s3, %s259
      %p261 = scmp.lt.s32.totalorder %s21, 0
      %s262 = scalar_select %p261, %s21, 0
      %s263 = scalar_lea.vmem %s4, %s262
      %p264 = scmp.lt.s32.totalorder %s20, 1
      %s265 = scalar_select %p264, %s20, 1
      %p266 = scmp.lt.s32.totalorder %s21, 0
      %s267 = scalar_select %p266, %s21, 0
      %s268 = sadd.s32 %s267, %s265
      %s269 = smul.addr %s268, 8
      %s270 = scalar_lea.vmem %s5, %s269
      %p272 = scmp.eq.s32.totalorder %s21, 0
      // Predicated region
      $region41: #{prenorm_forward.1} parent=39 // pred_check
        %p273 = pneg %p272
      $region42: #{prenorm_forward.1} parent=39 // pred_check_branch
        %275 = sbr.rel (%p273) target = $region44
      $region43: #{prenorm_forward.1} parent=39 // pred_region
        %v276 = vld [vmem:[%s256] sm:$0xff]
        %277 = vadd.xlane.f32.xlu0 %v276
        %v278 = vpop.xlane.xlu0 %277
        %v279 = vmul.f32 %v278, 0.03125
        %v280 = vsub.f32 %v276, %v279
        %v281 = vlaneseq
        %v282 = vand.u32 %v281, 127
        %vm283 = vcmp.lt.s32.totalorder %v282, 32
        %v284 = vsel %vm283, 1, 0
        %vm285 = vcmp.eq.s32.totalorder %v284, 1
        %v286 = vsel %vm285, %v280, 0.0
        %v287 = vmul.f32 %v286, %v286
        %288 = vadd.xlane.f32.xlu0 %v287
        %v289 = vpop.xlane.xlu0 %288
        %v290 = vmul.f32 %v289, 0.03125
        %v291 = vadd.f32 %v290, 1e-05
        %v292 = vrsqrt.pop %v291
        %v293 = vld [vmem:[%s1] sm:$0x1]
        %v295 = vlaneseq
        %v296 = vshrl.u32 %v295, 7
        %v297 = vsub.s32 0, %v296
        %v298 = vrot.slane %v293, %v297
        %v300 = vmul.f32 %v292, %v298
        %v301 = vmul.f32 %v286, %v300
        %v302 = vld [vmem:[%s2] sm:$0x1]
        %v304 = vlaneseq
        %v305 = vshrl.u32 %v304, 7
        %v306 = vsub.s32 0, %v305
        %v307 = vrot.slane %v302, %v306
        %v309 = vadd.f32 %v301, %v307
        %v310 = vpack.c.bf16 %v309, %v309
        %311 = vst [vmem:[#allocation2] sm:$0xf] %v310
      $region44: #{prenorm_forward.1} parent=39 // pred_fallthru
        _
      %v312 = vld [vmem:[#allocation2] sm:$0xf]
      %v313 = vld [vmem:[%s260] sm:$0xf]
      %v314 = vld [vmem:[%s260 + $0x4] sm:$0xf]
      %v315 = vld [vmem:[%s260 + $0x8] sm:$0xf]
      %v316 = vld [vmem:[%s260 + $0xc] sm:$0xf]
      %v317 = vld [vmem:[%s260 + $0x10] sm:$0xf]
      %v318 = vld [vmem:[%s260 + $0x14] sm:$0xf]
      %v319 = vld [vmem:[%s260 + $0x18] sm:$0xf]
      %v320 = vld [vmem:[%s260 + $0x1c] sm:$0xf]
      %v321 = vld [vmem:[%s260 + $0x20] sm:$0xf]
      %v322 = vld [vmem:[%s260 + $0x24] sm:$0xf]
      %v323 = vld [vmem:[%s260 + $0x28] sm:$0xf]
      %v324 = vld [vmem:[%s260 + $0x2c] sm:$0xf]
      %v325 = vld [vmem:[%s260 + $0x30] sm:$0xf]
      %v326 = vld [vmem:[%s260 + $0x34] sm:$0xf]
      %v327 = vld [vmem:[%s260 + $0x38] sm:$0xf]
      %v328 = vld [vmem:[%s260 + $0x3c] sm:$0xf]
      %v329 = vld [vmem:[%s263] sm:$0x1]
      %v331 = vlaneseq
      %v332 = vshrl.u32 %v331, 7
      %v333 = vsub.s32 0, %v332
      %v334 = vrot.slane %v329, %v333
      %v352 = vunpack.c.l.b16 %v313
      %v353 = vunpack.c.l.b16 %v314
      %v354 = vunpack.c.l.b16 %v315
      %v355 = vunpack.c.l.b16 %v316
      %v356 = vunpack.c.l.b16 %v317
      %v357 = vunpack.c.l.b16 %v318
      %v358 = vunpack.c.l.b16 %v319
      %v359 = vunpack.c.l.b16 %v320
      %v360 = vunpack.c.l.b16 %v321
      %v361 = vunpack.c.l.b16 %v322
      %v362 = vunpack.c.l.b16 %v323
      %v363 = vunpack.c.l.b16 %v324
      %v364 = vunpack.c.l.b16 %v325
      %v365 = vunpack.c.l.b16 %v326
      %v366 = vunpack.c.l.b16 %v327
      %v367 = vunpack.c.l.b16 %v328
      %v368 = vpack.c.b16 %v353, %v352
      %v369 = vpack.c.b16 %v355, %v354
      %v370 = vpack.c.b16 %v357, %v356
      %v371 = vpack.c.b16 %v359, %v358
      %v372 = vpack.c.b16 %v361, %v360
      %v373 = vpack.c.b16 %v363, %v362
      %v374 = vpack.c.b16 %v365, %v364
      %v375 = vpack.c.b16 %v367, %v366
      %384 = vmatprep.subr.bf16.mxu0 0
      %385 = vmatpush1.bf16.msra.mxu0 %v375
      %386 = vmatprep.subr.bf16.mxu0 0
      %387 = vmatpush1.bf16.msra.mxu0 %v374
      %388 = vmatprep.subr.bf16.mxu0 0
      %389 = vmatpush1.bf16.msra.mxu0 %v373
      %390 = vmatprep.subr.bf16.mxu0 0
      %391 = vmatpush1.bf16.msra.mxu0 %v372
      %392 = vmatprep.subr.bf16.mxu0 0
      %393 = vmatpush1.bf16.msra.mxu0 %v371
      %394 = vmatprep.subr.bf16.mxu0 0
      %395 = vmatpush1.bf16.msra.mxu0 %v370
      %396 = vmatprep.subr.bf16.mxu0 0
      %397 = vmatpush1.bf16.msra.mxu0 %v369
      %398 = vmatprep.subr.bf16.mxu0 0
      %399 = vmatpush1.bf16.msra.mxu0 %v368
      %400 = vmatprep.subr.bf16.mxu0 0
      %401 = vmatpush2.bf16.msra.mxu0 0
      %402 = vmatprep.subr.bf16.mxu0 0
      %403 = vmatpush2.bf16.msra.mxu0 0
      %404 = vmatprep.subr.bf16.mxu0 0
      %405 = vmatpush2.bf16.msra.mxu0 0
      %406 = vmatprep.subr.bf16.mxu0 0
      %407 = vmatpush2.bf16.msra.mxu0 0
      %408 = vmatprep.subr.bf16.mxu0 0
      %409 = vmatpush2.bf16.msra.mxu0 0
      %410 = vmatprep.subr.bf16.mxu0 0
      %411 = vmatpush2.bf16.msra.mxu0 0
      %412 = vmatprep.subr.bf16.mxu0 0
      %413 = vmatpush2.bf16.msra.mxu0 0
      %414 = vmatprep.subr.bf16.mxu0 0
      %415 = vmatpush2.bf16.msra.mxu0 0
      %416 = vmatprep.mubr.bf16.mxu0 0
      %417 = vmatmul.mubr.bf16.gmra.mxu0 %v312
      %v418 = vpop.f32.mrf.mxu0
      %v419 = vadd.f32 %v334, %v418
      %v420 = vpop.f32.mrf.mxu0
      %v421 = vpop.f32.mrf.mxu0
      %v422 = vpop.f32.mrf.mxu0
      %423 = vdwg.mxu0
      %424 = vst [vmem:[%s270] sm:$0xff] %v419
      %p425 = scmp.lt.s32.totalorder %s20, 1
      %s426 = scalar_select %p425, %s20, 1
      %p427 = scmp.lt.s32.totalorder %s21, 0
      %s428 = scalar_select %p427, %s21, 0
      %s429 = sadd.s32 %s428, %s426
      %s430 = smul.addr %s429, 8
      %s431 = scalar_lea.vmem %s5, %s430
      // Predicated region
      $region45: #{prenorm_forward.1} parent=39 // pred_check
        %p432 = pneg %p168
      $region46: #{prenorm_forward.1} parent=39 // pred_check_branch
        %434 = sbr.rel (%p432) target = $region48
      $region47: #{prenorm_forward.1} parent=39 // pred_region
        _
      $region48: #{prenorm_forward.1} parent=39 // pred_fallthru
        _
    $region40: #{prenorm_forward.1} parent=5 // pred_fallthru
      _
    %p435 = scmp.le.s32.totalorder 2, %s11
    // Predicated region
    $region49: #{prenorm_forward.1} parent=5 // pred_check
      %p436 = pneg %p435
    $region50: #{prenorm_forward.1} parent=5 // pred_check_branch
      %438 = sbr.rel (%p436) target = $region52
    $region51: #{prenorm_forward.1} parent=5 // pred_region
      %s439 = ssub.s32 %s11, 2
      // Predicated region
      $region53: #{prenorm_forward.1} parent=51 // pred_check
        %p440 = pneg %p174
      $region54: #{prenorm_forward.1} parent=51 // pred_check_branch
        %442 = sbr.rel (%p440) target = $region56
      $region55: #{prenorm_forward.1} parent=51 // pred_region
        %p443 = scmp.lt.s32.totalorder %s22, 1
        %s444 = scalar_select %p443, %s22, 1
        %p445 = scmp.lt.s32.totalorder %s23, 0
        %s446 = scalar_select %p445, %s23, 0
        %s447 = sadd.s32 %s446, %s444
        %s448 = smul.addr %s447, 8
        %s449 = scalar_lea.vmem %s5, %s448
      $region56: #{prenorm_forward.1} parent=51 // pred_fallthru
        _
    $region52: #{prenorm_forward.1} parent=5 // pred_fallthru
      _
  $region6: #{prenorm_forward.1} parent=0 // loop_footer
    %s15 = sadd.s32 1, %s11
  $region7: #{prenorm_forward.1} parent=0 // loop_footer_branch
    %10 = sbr.rel target = $region3
  $region8: #{prenorm_forward.1} parent=0 // loop_exit
    _

</llo_original>
